<compile_context>
chip_gen: v6e
topology: v6e:2x2x1
jax: 0.10.0
libtpu: 0.0.40
codegen_flags: <defaults>
</compile_context>

<pallas_src>
import math

import jax
import jax.numpy as jnp
from jax.experimental import pallas as pl
from jax.experimental.pallas import tpu as pltpu

_TWO_PI = 2.0 * math.pi


def _fourier_features_kernel(x_ref, wt_ref, o_ref):
    # x_ref : [TB, in_features]          (VMEM, pipelined over batch)
    # wt_ref: [in_features, half]        (VMEM-resident across grid steps)
    # o_ref : [TB, 2 * half]             (VMEM, pipelined over batch)
    x = x_ref[...].astype(jnp.float32) * _TWO_PI   # fold 2*pi here (cheap VPU op)
    w = wt_ref[...].astype(jnp.float32)
    in_features, half = w.shape

    if in_features <= 16:
        # Tiny contraction: VPU broadcast MACs instead of an under-utilized MXU.
        f = x[:, 0:1] * w[0:1, :]
        for k in range(1, in_features):
            f = f + x[:, k : k + 1] * w[k : k + 1, :]
    else:
        f = jnp.dot(x, w, preferred_element_type=jnp.float32)

    # Two sliced stores: no concatenated (TB, out_features) f32 temp.
    o_ref[:, :half] = jnp.cos(f).astype(o_ref.dtype)
    o_ref[:, half:] = jnp.sin(f).astype(o_ref.dtype)


def prepare_fourier_weight(weight):
    """One-time (module/buffer-init) prep: transpose the PyTorch-layout weight.

    weight: [out_features // 2, in_features]  ->  [in_features, out_features // 2]
    """
    return jnp.asarray(weight, jnp.float32).T


def _round_up(v, m):
    return ((v + m - 1) // m) * m


def fourier_features(x, weight_t, *, out_dtype=None):
    """x: [batch, in_features]; weight_t: [in_features, out_features // 2]."""
    batch, in_features = x.shape
    in_w, half = weight_t.shape
    assert in_features == in_w
    out_features = 2 * half
    out_dtype = jnp.dtype(out_dtype if out_dtype is not None else x.dtype)

    in_bytes = jnp.dtype(x.dtype).itemsize
    out_bytes = out_dtype.itemsize
    # Sublane packing of the output tile: 8 rows/vreg for 32-bit, 16 for 16-bit.
    sub = 16 if out_bytes == 2 else 8

    # ---- batch-tile selection ------------------------------------------------
    # Target ~1.5 MiB of output per grid step; cap so the double-buffered
    # x + out blocks fit comfortably under v5e's 16 MiB scoped-VMEM default.
    row_out_bytes = max(out_features * out_bytes, 1)
    row_in_bytes = in_features * in_bytes
    target_out_bytes = 3 * (1 << 19)          # 1.5 MiB of output per step
    vmem_block_budget = 12 * (1 << 20)        # budget for 2x(x block + out block)
    tb = max(512, target_out_bytes // row_out_bytes)
    tb = min(tb, vmem_block_budget // (2 * (row_out_bytes + row_in_bytes)))
    tb = max(sub, (tb // sub) * sub)

    if batch > tb:
        pass                                   # already >= 2 grid steps
    elif batch >= 2 * sub:
        # Split into >= 2 steps so the "parallel" axis uses both v7x TCs and
        # the pipeline overlaps DMA with compute.
        tb = _round_up(-(-batch // 2), sub)
    else:
        tb = batch                             # single tiny block

    grid = (pl.cdiv(batch, tb),)

    cost = pl.CostEstimate(
        flops=2 * batch * in_features * half,
        transcendentals=batch * out_features,
        bytes_accessed=(
            batch * in_features * in_bytes
            + in_features * half * 4
            + batch * out_features * out_bytes
        ),
    )

    return pl.pallas_call(
        _fourier_features_kernel,
        out_shape=jax.ShapeDtypeStruct((batch, out_features), out_dtype),
        grid_spec=pltpu.PrefetchScalarGridSpec(
            num_scalar_prefetch=0,
            grid=grid,
            in_specs=[
                pl.BlockSpec((tb, in_features), lambda i: (i, 0)),
                # Weight stays VMEM-resident across all grid steps (DMA'd once).
                pl.BlockSpec((in_features, half), lambda i: (0, 0)),
            ],
            out_specs=pl.BlockSpec((tb, out_features), lambda i: (i, 0)),
        ),
        compiler_params=pltpu.CompilerParams(
            dimension_semantics=("parallel",),
        ),
        cost_estimate=cost,
    )(x, weight_t)


def fourier_features_ref(x, weight):
    f = 2.0 * math.pi * (x @ weight.T)
    return jnp.concatenate([jnp.cos(f), jnp.sin(f)], axis=-1)


if __name__ == "__main__":
    in_features = 4
    out_features = 32  # must be even
    std = 1.0

    key = jax.random.PRNGKey(0)
    kw, kx1, kx2, kx3 = jax.random.split(key, 4)

    # Deterministic "buffer" init: randn([out_features // 2, in_features]) * std
    weight = jax.random.normal(kw, (out_features // 2, in_features), jnp.float32) * std
    # One-time (module-init) transpose; nothing else is prepared per call.
    weight_t = prepare_fourier_weight(weight)

    # Small single-block case.
    x_small = jax.random.normal(kx1, (8, in_features), jnp.float32)
    out_small = jax.block_until_ready(fourier_features(x_small, weight_t))
    ref_small = fourier_features_ref(x_small, weight)
    assert out_small.shape == (8, out_features)
    assert jnp.allclose(out_small, ref_small, atol=1e-5, rtol=1e-5)

    # Multi-block case exercising the batch-tiled pipeline (>= 2 grid steps).
    x_big = jax.random.normal(kx2, (512, in_features), jnp.float32)
    out_big = jax.block_until_ready(fourier_features(x_big, weight_t))
    ref_big = fourier_features_ref(x_big, weight)
    assert out_big.shape == (512, out_features)
    assert jnp.allclose(out_big, ref_big, atol=1e-5, rtol=1e-5)

    # Ragged batch (partial last block, OOB-masked rows) + bf16 output path.
    x_rag = jax.random.normal(kx3, (300, in_features), jnp.float32)
    out_bf16 = jax.block_until_ready(
        fourier_features(x_rag, weight_t, out_dtype=jnp.bfloat16)
    )
    ref_rag = fourier_features_ref(x_rag, weight)
    assert out_bf16.shape == (300, out_features)
    assert out_bf16.dtype == jnp.bfloat16
    assert jnp.allclose(out_bf16.astype(jnp.float32), ref_rag, atol=2e-2, rtol=2e-2)

    print("KERNEL_OK")
</pallas_src>

<mosaic_0001>
module attributes {stable_mosaic.version = 11 : i64} {
  func.func @_fourier_features_kernel(%arg0: i32, %arg1: memref<8x4xf32, #tpu.memory_space<vmem>>, %arg2: memref<4x16xf32, #tpu.memory_space<vmem>>, %arg3: memref<8x32xf32, #tpu.memory_space<vmem>>) attributes {dimension_semantics = [#tpu.dimension_semantics<parallel>], iteration_bounds = array<i64: 1>, scalar_prefetch = 0 : i64, scratch_operands = 0 : i64, tpu.core_type = #tpu.core_type<tc>, window_params = [{transform_indices = @transform_0, window_bounds = array<i64: 8, 4>}, {pipeline_mode = #tpu.pipeline_mode<synchronous>, transform_indices = @transform_1, window_bounds = array<i64: 4, 16>}, {transform_indices = @transform_2, window_bounds = array<i64: 8, 32>}]} {
    %c0 = arith.constant 0 : index
    %c0_0 = arith.constant 0 : index
    %0 = vector.load %arg1[%c0, %c0_0] : memref<8x4xf32, #tpu.memory_space<vmem>>, vector<8x4xf32>
    %cst = arith.constant 6.28318548 : f32
    %1 = vector.broadcast %cst : f32 to vector<8x4xf32>
    %2 = arith.mulf %0, %1 : vector<8x4xf32>
    %c0_1 = arith.constant 0 : index
    %c0_2 = arith.constant 0 : index
    %3 = vector.load %arg2[%c0_1, %c0_2] : memref<4x16xf32, #tpu.memory_space<vmem>>, vector<4x16xf32>
    %4 = vector.extract_strided_slice %2 {offsets = [0, 0], sizes = [8, 1], strides = [1, 1]} : vector<8x4xf32> to vector<8x1xf32>
    %5 = vector.extract_strided_slice %3 {offsets = [0, 0], sizes = [1, 16], strides = [1, 1]} : vector<4x16xf32> to vector<1x16xf32>
    %6 = vector.broadcast %4 : vector<8x1xf32> to vector<8x16xf32>
    %7 = vector.broadcast %5 : vector<1x16xf32> to vector<8x16xf32>
    %8 = arith.mulf %6, %7 : vector<8x16xf32>
    %9 = vector.extract_strided_slice %2 {offsets = [0, 1], sizes = [8, 1], strides = [1, 1]} : vector<8x4xf32> to vector<8x1xf32>
    %10 = vector.extract_strided_slice %3 {offsets = [1, 0], sizes = [1, 16], strides = [1, 1]} : vector<4x16xf32> to vector<1x16xf32>
    %11 = vector.broadcast %9 : vector<8x1xf32> to vector<8x16xf32>
    %12 = vector.broadcast %10 : vector<1x16xf32> to vector<8x16xf32>
    %13 = arith.mulf %11, %12 : vector<8x16xf32>
    %14 = arith.addf %8, %13 : vector<8x16xf32>
    %15 = vector.extract_strided_slice %2 {offsets = [0, 2], sizes = [8, 1], strides = [1, 1]} : vector<8x4xf32> to vector<8x1xf32>
    %16 = vector.extract_strided_slice %3 {offsets = [2, 0], sizes = [1, 16], strides = [1, 1]} : vector<4x16xf32> to vector<1x16xf32>
    %17 = vector.broadcast %15 : vector<8x1xf32> to vector<8x16xf32>
    %18 = vector.broadcast %16 : vector<1x16xf32> to vector<8x16xf32>
    %19 = arith.mulf %17, %18 : vector<8x16xf32>
    %20 = arith.addf %14, %19 : vector<8x16xf32>
    %21 = vector.extract_strided_slice %2 {offsets = [0, 3], sizes = [8, 1], strides = [1, 1]} : vector<8x4xf32> to vector<8x1xf32>
    %22 = vector.extract_strided_slice %3 {offsets = [3, 0], sizes = [1, 16], strides = [1, 1]} : vector<4x16xf32> to vector<1x16xf32>
    %23 = vector.broadcast %21 : vector<8x1xf32> to vector<8x16xf32>
    %24 = vector.broadcast %22 : vector<1x16xf32> to vector<8x16xf32>
    %25 = arith.mulf %23, %24 : vector<8x16xf32>
    %26 = arith.addf %20, %25 : vector<8x16xf32>
    %27 = math.cos %26 : vector<8x16xf32>
    %c0_3 = arith.constant 0 : index
    %c0_4 = arith.constant 0 : index
    %28 = vector.load %arg3[%c0_3, %c0_4] : memref<8x32xf32, #tpu.memory_space<vmem>>, vector<8x16xf32>
    tpu.vector_store %arg3[%c0_3, %c0_4], %27 {strides = array<i32>} : memref<8x32xf32, #tpu.memory_space<vmem>>, vector<8x16xf32>,
    %29 = math.sin %26 : vector<8x16xf32>
    %c0_5 = arith.constant 0 : index
    %c16 = arith.constant 16 : index
    %30 = vector.load %arg3[%c0_5, %c16] : memref<8x32xf32, #tpu.memory_space<vmem>>, vector<8x16xf32>
    tpu.vector_store %arg3[%c0_5, %c16], %29 {strides = array<i32>} : memref<8x32xf32, #tpu.memory_space<vmem>>, vector<8x16xf32>,
    return
  }
  func.func @transform_0(%arg0: i32) -> (i32, i32) {
    %c0_i32 = arith.constant 0 : i32
    %c0_i32_0 = arith.constant 0 : i32
    return %arg0, %c0_i32 : i32, i32
  }
  func.func @transform_1(%arg0: i32) -> (i32, i32) {
    %c0_i32 = arith.constant 0 : i32
    %c0_i32_0 = arith.constant 0 : i32
    %c0_i32_1 = arith.constant 0 : i32
    return %c0_i32, %c0_i32_0 : i32, i32
  }
  func.func @transform_2(%arg0: i32) -> (i32, i32) {
    %c0_i32 = arith.constant 0 : i32
    %c0_i32_0 = arith.constant 0 : i32
    return %arg0, %c0_i32 : i32, i32
  }
}

</mosaic_0001>

<llo_original>
// kernel: tpu_custom_call.1
$region0: #{tpu_custom_call.1}
  #allocation0 [shape = 'u32[]', space=smem, size = 0x4, offset = 0x4, fixed_abs, tag = 'smem constant byte address 0x4 - core index']
  #allocation1 [shape = 'u32[144,128]{1,0:T(1,128)}', space=vmem, size = 0x12000, scoped, tag = 'internal scratch']
  %s0 = inlined_call_operand.vmem [shape: f32[8,4], index: 0, kind: input, shape index: {}]
  %s1 = inlined_call_operand.vmem [shape: f32[4,16], index: 1, kind: input, shape index: {}]
  %s2 = inlined_call_operand.hbm [shape: f32[8,32], index: 2, kind: output, shape index: {}]
  %s3 = sld [smem:[#allocation0]]
  $region18: #{tpu_custom_call.1} parent=0
    _
  %s5 = ssub.s32 1, %s3
  %s6 = scalar_select 0, %s5, %s3
  $region1: #{tpu_custom_call.1} parent=0
    #allocation2 [shape = 'u8[4096]{0}', space=vmem, size = 0x1000, scoped, tag = 'output window, operand 0, single buffered']
    #allocation3 [shape = 's32[1]{0}', space=sflag, size = 0x4, scoped, tag = 'scoped memory for tpu_custom_call.1']
    %7 = vsyncpa [#allocation3], 0
    // Predicated region
    $region2: #{tpu_custom_call.1} parent=1 // pred_check
      _
    $region3: #{tpu_custom_call.1} parent=1 // pred_check_branch
      %9 = sbr.rel (0) target = $region5
    $region4: #{tpu_custom_call.1} parent=1 // pred_region
      _
    $region5: #{tpu_custom_call.1} parent=1 // pred_fallthru
      _
    // Predicated region
    $region6: #{tpu_custom_call.1} parent=1 // pred_check
      _
    $region7: #{tpu_custom_call.1} parent=1 // pred_check_branch
      %11 = sbr.rel (0) target = $region9
    $region8: #{tpu_custom_call.1} parent=1 // pred_region
      _
    $region9: #{tpu_custom_call.1} parent=1 // pred_fallthru
      _
    %v12 = vld [vmem:[%s0] sm:$0xff]
    %v13 = vmul.f32 %v12, 6.2831855
    %v14 = vld [vmem:[%s1] sm:$0xf]
    %16 = vset.pattern.permute.xlu0 0
    %17 = vperm.xlu0 %16, %v13
    %v18 = vpop.permute.xlu0 %17
    %v20 = vlaneseq
    %v21 = vshrl.u32 %v20, 7
    %v22 = vsub.s32 0, %v21
    %v23 = vrot.slane %v14, %v22
    %v24 = vmul.f32 %v18, %v23
    %25 = vset.pattern.permute.xlu0 1
    %26 = vperm.xlu0 %25, %v13
    %v27 = vpop.permute.xlu0 %26
    %v29 = vlaneseq
    %v30 = vshrl.u32 %v29, 7
    %v31 = vsub.s32 1, %v30
    %v32 = vrot.slane %v14, %v31
    %v33 = vmul.f32 %v27, %v32
    %v34 = vadd.f32 %v24, %v33
    %35 = vset.pattern.permute.xlu0 2
    %36 = vperm.xlu0 %35, %v13
    %v37 = vpop.permute.xlu0 %36
    %v39 = vlaneseq
    %v40 = vshrl.u32 %v39, 7
    %v41 = vsub.s32 2, %v40
    %v42 = vrot.slane %v14, %v41
    %v43 = vmul.f32 %v37, %v42
    %v44 = vadd.f32 %v34, %v43
    %45 = vset.pattern.permute.xlu0 3
    %46 = vperm.xlu0 %45, %v13
    %v47 = vpop.permute.xlu0 %46
    %v49 = vlaneseq
    %v50 = vshrl.u32 %v49, 7
    %v51 = vsub.s32 3, %v50
    %v52 = vrot.slane %v14, %v51
    %v53 = vmul.f32 %v47, %v52
    %v54 = vadd.f32 %v44, %v53
    %v55 = vand.u32 2147483647, %v54
    %vm56 = vcmp.le.f32.partialorder %v55, 0.7853982
    %vm57 = vcmp.lt.s32.totalorder %v54, 0
    %v58 = vand.u32 %v54, 2139095040
    %v59 = vshrl.u32 %v58, 23
    %v60 = vsub.s32 %v59, 127
    %v61 = vand.u32 2147483647, %v54
    %v62 = vand.u32 %v61, 8388607
    %v63 = vor.u32 %v62, 8388608
    %v64 = vsub.s32 0, %v63
    %v65 = vadd.s32 %v60, 1
    %vm66 = vcmp.gt.s32.totalorder %v65, 0
    %v67 = vsel %vm66, %v65, 0
    %v68 = vshrl.u32 %v67, 5
    %v69 = vand.u32 %v67, 31
    %v70 = vsub.s32 32, %v69
    %v71 = vshrl.u32 683565275, %v70
    %v72 = vshll.u32 683565275, %v69
    %v73 = vshrl.u32 2475754826, %v70
    %v74 = vor.u32 %v72, %v73
    %v75 = vshll.u32 2475754826, %v69
    %v76 = vshrl.u32 2131351028, %v70
    %v77 = vor.u32 %v75, %v76
    %v78 = vshll.u32 2131351028, %v69
    %v79 = vshrl.u32 2102212464, %v70
    %v80 = vor.u32 %v78, %v79
    %v81 = vshll.u32 2102212464, %v69
    %v82 = vshrl.u32 920167782, %v70
    %v83 = vor.u32 %v81, %v82
    %v84 = vshll.u32 920167782, %v69
    %v85 = vshrl.u32 1326507024, %v70
    %v86 = vor.u32 %v84, %v85
    %vm87 = vcmp.lt.s32.totalorder %v68, 1
    %vm88 = vcmp.lt.s32.totalorder %v68, 2
    %vm89 = vcmp.lt.s32.totalorder %v68, 3
    %vm90 = vcmp.lt.s32.totalorder %v68, 4
    %v91 = vsel %vm87, %v71, %v74
    %v92 = vsel %vm90, %v80, 2102212464
    %v93 = vsel %vm89, %v77, %v92
    %v94 = vsel %vm88, %v91, %v93
    %v95 = vsel %vm87, %v74, %v77
    %v96 = vsel %vm90, %v83, 920167782
    %v97 = vsel %vm89, %v80, %v96
    %v98 = vsel %vm88, %v95, %v97
    %v99 = vsel %vm87, %v77, %v80
    %v100 = vsel %vm90, %v86, 1326507024
    %v101 = vsel %vm89, %v83, %v100
    %v102 = vsel %vm88, %v99, %v101
    %v103 = vshll.u32 %v63, 8
    %v104 = vmul.u32.u64.compose %v103, %v102
    %v105 = vextract.low.u32 %v104
    %v106 = vextract.high.u32 %v104
    %v107 = vmul.u32.u64.compose %v103, %v98
    %v108 = vextract.low.u32 %v107
    %v109 = vextract.high.u32 %v107
    %v110 = vmul.u32 %v103, %v94
    %v111 = vadd.s32 %v106, %v108
    %vm112 = vc.u32 %v106, %v108
    %v113 = vadd.s32 %v109, 1
    %v114 = vsel %vm112, %v113, %v109
    %v115 = vadd.s32 %v110, %v114
    %v116 = vadd.s32 %v115, 536870912
    %v117 = vshrl.u32 %v116, 30
    %v118 = vshll.u32 %v117, 30
    %v119 = vsub.s32 %v115, %v118
    %vm120 = vcmp.lt.s32.totalorder %v119, 0
    %v121 = vsub.s32 0, %v119
    %v122 = vsel %vm120, %v121, %v119
    %v123 = vclz %v122
    %v124 = vsub.s32 %v123, 2
    %vm125 = vcmp.gt.s32.totalorder 0, %v124
    %v126 = vsel %vm125, 0, %v124
    %v127 = vsub.s32 32, %v126
    %v128 = vshll.u32 %v119, %v126
    %v129 = vshrl.u32 %v111, %v127
    %v130 = vor.u32 %v128, %v129
    %v131 = vsub.s32 4294967266, %v126
    %v132 = vadd.s32 %v131, 127
    %v133 = vshll.u32 %v132, 23
    %v134 = vor.u32 4788187, %v133
    %v135 = vand.u32 2147483647, %v134
    %v137 = vcvt.s32.f32 %v130
    %v138 = vmul.f32 %v137, %v135
    %v139 = vxor.u32 %v138, 2147483648
    %v140 = vsel %vm57, %v139, %v138
    %v141 = vsub.s32 4, %v117
    %v142 = vsel %vm57, %v141, %v117
    %v143 = vsel %vm56, %v54, %v140
    %v144 = vsel %vm56, 0, %v142
    %v145 = vcosq.f32.pop %v143
    %v146 = vsinq.f32.pop %v143
    %vm147 = vweird.f32 %v54
    %v148 = vand.u32 %v144, 3
    %vm149 = vcmp.lt.s32.totalorder %v148, 2
    %vm150 = vcmp.eq.s32.totalorder %v148, 0
    %v151 = vxor.u32 %v146, 2147483648
    %v152 = vsel %vm150, %v145, %v151
    %vm153 = vcmp.eq.s32.totalorder %v148, 2
    %v154 = vxor.u32 %v145, 2147483648
    %v155 = vsel %vm153, %v154, %v146
    %v156 = vsel %vm149, %v152, %v155
    %v157 = vsel %vm147, nan, %v156
    %vm158 = vcmask 130048
    %159 = vst.msk [vmem:[#allocation2] sm:$0xff] %vm158, %v157
    %v160 = vand.u32 2147483647, %v54
    %vm161 = vcmp.le.f32.partialorder %v160, 0.7853982
    %vm162 = vcmp.lt.s32.totalorder %v54, 0
    %v163 = vand.u32 %v54, 2139095040
    %v164 = vshrl.u32 %v163, 23
    %v165 = vsub.s32 %v164, 127
    %v166 = vand.u32 2147483647, %v54
    %v167 = vand.u32 %v166, 8388607
    %v168 = vor.u32 %v167, 8388608
    %v169 = vsub.s32 0, %v168
    %v170 = vadd.s32 %v165, 1
    %vm171 = vcmp.gt.s32.totalorder %v170, 0
    %v172 = vsel %vm171, %v170, 0
    %v173 = vshrl.u32 %v172, 5
    %v174 = vand.u32 %v172, 31
    %v175 = vsub.s32 32, %v174
    %v176 = vshrl.u32 683565275, %v175
    %v177 = vshll.u32 683565275, %v174
    %v178 = vshrl.u32 2475754826, %v175
    %v179 = vor.u32 %v177, %v178
    %v180 = vshll.u32 2475754826, %v174
    %v181 = vshrl.u32 2131351028, %v175
    %v182 = vor.u32 %v180, %v181
    %v183 = vshll.u32 2131351028, %v174
    %v184 = vshrl.u32 2102212464, %v175
    %v185 = vor.u32 %v183, %v184
    %v186 = vshll.u32 2102212464, %v174
    %v187 = vshrl.u32 920167782, %v175
    %v188 = vor.u32 %v186, %v187
    %v189 = vshll.u32 920167782, %v174
    %v190 = vshrl.u32 1326507024, %v175
    %v191 = vor.u32 %v189, %v190
    %vm192 = vcmp.lt.s32.totalorder %v173, 1
    %vm193 = vcmp.lt.s32.totalorder %v173, 2
    %vm194 = vcmp.lt.s32.totalorder %v173, 3
    %vm195 = vcmp.lt.s32.totalorder %v173, 4
    %v196 = vsel %vm192, %v176, %v179
    %v197 = vsel %vm195, %v185, 2102212464
    %v198 = vsel %vm194, %v182, %v197
    %v199 = vsel %vm193, %v196, %v198
    %v200 = vsel %vm192, %v179, %v182
    %v201 = vsel %vm195, %v188, 920167782
    %v202 = vsel %vm194, %v185, %v201
    %v203 = vsel %vm193, %v200, %v202
    %v204 = vsel %vm192, %v182, %v185
    %v205 = vsel %vm195, %v191, 1326507024
    %v206 = vsel %vm194, %v188, %v205
    %v207 = vsel %vm193, %v204, %v206
    %v208 = vshll.u32 %v168, 8
    %v209 = vmul.u32.u64.compose %v208, %v207
    %v210 = vextract.low.u32 %v209
    %v211 = vextract.high.u32 %v209
    %v212 = vmul.u32.u64.compose %v208, %v203
    %v213 = vextract.low.u32 %v212
    %v214 = vextract.high.u32 %v212
    %v215 = vmul.u32 %v208, %v199
    %v216 = vadd.s32 %v211, %v213
    %vm217 = vc.u32 %v211, %v213
    %v218 = vadd.s32 %v214, 1
    %v219 = vsel %vm217, %v218, %v214
    %v220 = vadd.s32 %v215, %v219
    %v221 = vadd.s32 %v220, 536870912
    %v222 = vshrl.u32 %v221, 30
    %v223 = vshll.u32 %v222, 30
    %v224 = vsub.s32 %v220, %v223
    %vm225 = vcmp.lt.s32.totalorder %v224, 0
    %v226 = vsub.s32 0, %v224
    %v227 = vsel %vm225, %v226, %v224
    %v228 = vclz %v227
    %v229 = vsub.s32 %v228, 2
    %vm230 = vcmp.gt.s32.totalorder 0, %v229
    %v231 = vsel %vm230, 0, %v229
    %v232 = vsub.s32 32, %v231
    %v233 = vshll.u32 %v224, %v231
    %v234 = vshrl.u32 %v216, %v232
    %v235 = vor.u32 %v233, %v234
    %v236 = vsub.s32 4294967266, %v231
    %v237 = vadd.s32 %v236, 127
    %v238 = vshll.u32 %v237, 23
    %v239 = vor.u32 4788187, %v238
    %v240 = vand.u32 2147483647, %v239
    %v242 = vcvt.s32.f32 %v235
    %v243 = vmul.f32 %v242, %v240
    %v244 = vxor.u32 %v243, 2147483648
    %v245 = vsel %vm162, %v244, %v243
    %v246 = vsub.s32 4, %v222
    %v247 = vsel %vm162, %v246, %v222
    %v248 = vsel %vm161, %v54, %v245
    %v249 = vsel %vm161, 0, %v247
    %v250 = vcosq.f32.pop %v248
    %v251 = vsinq.f32.pop %v248
    %vm252 = vweird.f32 %v54
    %v253 = vadd.s32 %v249, 3
    %v254 = vand.u32 %v253, 3
    %vm255 = vcmp.lt.s32.totalorder %v254, 2
    %vm256 = vcmp.eq.s32.totalorder %v254, 0
    %v257 = vxor.u32 %v251, 2147483648
    %v258 = vsel %vm256, %v250, %v257
    %vm259 = vcmp.eq.s32.totalorder %v254, 2
    %v260 = vxor.u32 %v250, 2147483648
    %v261 = vsel %vm259, %v260, %v251
    %v262 = vsel %vm255, %v258, %v261
    %v263 = vsel %vm252, nan, %v262
    %265 = vrot.lane.b32.xlu0 %v263, 16
    %v266 = vpop.permute.xlu0 %265
    %vm268 = vcmask 261248
    %269 = vst.msk [vmem:[#allocation2] sm:$0xff] %vm268, %v266
    // Predicated region
    $region10: #{tpu_custom_call.1} parent=1 // pred_check
      _
    $region11: #{tpu_custom_call.1} parent=1 // pred_check_branch
      %271 = sbr.rel (0) target = $region13
    $region12: #{tpu_custom_call.1} parent=1 // pred_region
      %s273 = ssub.s32 128, 128
      %274 = vsyncadd [#allocation3], %s273
      %s276 = sshll.u32 [#allocation2], 4
      %s277 = int_to_ptr.vmem [resolvable:$true] %s276
      %279 = dma.vmem_to_hbm [thread:$0]  %s277, 128, %s2, [#allocation3]
    $region13: #{tpu_custom_call.1} parent=1 // pred_fallthru
      _
    // Predicated region
    $region14: #{tpu_custom_call.1} parent=1 // pred_check
      _
    $region15: #{tpu_custom_call.1} parent=1 // pred_check_branch
      %281 = sbr.rel (0) target = $region17
    $region16: #{tpu_custom_call.1} parent=1 // pred_region
      %282 = dma.done [#allocation3], 128
    $region17: #{tpu_custom_call.1} parent=1 // pred_fallthru
      _
    %283 = vsyncpa [#allocation3], 1

</llo_original>
